<compile_context>
chip_gen: v6e
topology: v6e:2x2x1
jax: 0.10.0
libtpu: 0.0.40
codegen_flags: <defaults>
</compile_context>

<pallas_src>
import functools

import jax
import jax.numpy as jnp
from jax import lax
from jax.experimental import pallas as pl
from jax.experimental.pallas import tpu as pltpu


# ---------------------------------------------------------------------------
# Pre-pass (batched over all T*B rows, off the serial time chain):
#   xhat0 = x @ D0^T          (input decorrelation)
#   u     = xhat0 @ Wf0^T     (feed-forward part of the hidden pre-activation)
# ---------------------------------------------------------------------------
def rnn_pre_kernel(x_ref, d0t_ref, wf0t_ref, xhat0_ref, u_ref):
    xhat0 = jnp.dot(x_ref[...], d0t_ref[...], preferred_element_type=jnp.float32)
    xhat0_ref[...] = xhat0
    u_ref[...] = jnp.dot(xhat0, wf0t_ref[...], preferred_element_type=jnp.float32)


# ---------------------------------------------------------------------------
# Recurrence (the only serially-dependent part). One grid step == one chunk of
# TT timesteps; the state is carried through the fully unrolled inner loop in
# vregs and handed to the next chunk through a VMEM scratch.
#   h1    = u_t + state @ Wr0^T
#   x1    = tanh(h1)
#   xhat1 = x1 @ D1^T          (per-step output and next-step state outs[1])
# ---------------------------------------------------------------------------
def rnn_rec_kernel(u_ref, h0_ref, wr0t_ref, d1t_ref, xhat1_ref, state_ref):
    c = pl.program_id(0)

    # Initialise the recurrent state (outs[1]) once, on the first chunk.
    @pl.when(c == 0)
    def _():
        state_ref[...] = h0_ref[...]

    wr0t = wr0t_ref[...]
    d1t = d1t_ref[...]
    tt = u_ref.shape[0]

    def step(t, state):
        # TODO(synk): on v7x the "+ u_ref[t]" could be folded into the MXU
        # result-buffer accumulation via explicit pltpu.matmul_* driving.
        h1 = u_ref[t] + jnp.dot(state, wr0t, preferred_element_type=jnp.float32)
        xhat1 = jnp.dot(jnp.tanh(h1), d1t, preferred_element_type=jnp.float32)
        xhat1_ref[t] = xhat1
        return xhat1

    # Fully unrolled serial chain; carry lives in vregs.
    state_ref[...] = lax.fori_loop(0, tt, step, state_ref[...], unroll=True)


# ---------------------------------------------------------------------------
# Post-pass (batched over all T*B rows, off the serial time chain):
#   y = xhat1 @ Wf1^T          (act_func_out = identity)
# ---------------------------------------------------------------------------
def rnn_post_kernel(xhat1_ref, wf1t_ref, y_ref):
    y_ref[...] = jnp.dot(xhat1_ref[...], wf1t_ref[...],
                         preferred_element_type=jnp.float32)


def rnn_forward_sequence(x_seq, out1_init, D0, D1, Wf0, Wr0, Wf1, *,
                         time_chunk=64):
    """Run T timesteps of the RNN recurrence with Pallas TPU kernels.

    x_seq:     (T, B, n0)  input sequence
    out1_init: (B, n1)     initial recurrent state outs[1] (zeros after reset_states)
    D0:(n0,n0) D1:(n1,n1) Wf0:(n1,n0) Wr0:(n1,n1) Wf1:(n2,n1)  (PyTorch (out,in))
    Returns (y_seq (T,B,n2), xhat0_seq (T,B,n0), xhat1_seq (T,B,n1)).
    """
    f32 = jnp.float32
    T, B, n0 = x_seq.shape
    n1 = Wf0.shape[0]
    n2 = Wf1.shape[0]

    x_seq = x_seq.astype(f32)
    out1_init = out1_init.astype(f32)

    # Hoisted ONCE per sequence: PyTorch (out,in) -> (in,out) transposes.
    d0t = D0.T.astype(f32)      # (n0, n0)
    wf0t = Wf0.T.astype(f32)    # (n0, n1)
    wr0t = Wr0.T.astype(f32)    # (n1, n1)
    d1t = D1.T.astype(f32)      # (n1, n1)
    wf1t = Wf1.T.astype(f32)    # (n1, n2)

    M = T * B
    x2d = x_seq.reshape(M, n0)

    # ---- pre-pass: two batched matmuls with M = T*B rows --------------------
    xhat0_2d, u_2d = pl.pallas_call(
        rnn_pre_kernel,
        out_shape=(jax.ShapeDtypeStruct((M, n0), f32),
                   jax.ShapeDtypeStruct((M, n1), f32)),
        grid=(1,),
        in_specs=[pl.BlockSpec((M, n0), lambda i: (0, 0)),
                  pl.BlockSpec((n0, n0), lambda i: (0, 0)),
                  pl.BlockSpec((n0, n1), lambda i: (0, 0))],
        out_specs=(pl.BlockSpec((M, n0), lambda i: (0, 0)),
                   pl.BlockSpec((M, n1), lambda i: (0, 0))),
    )(x2d, d0t, wf0t)

    # ---- serial recurrence, blocked over time -------------------------------
    TT = min(T, time_chunk)
    n_chunks = -(-T // TT)
    T_pad = n_chunks * TT
    u_seq = u_2d.reshape(T, B, n1)
    if T_pad != T:
        # Padded trailing steps compute garbage that is sliced off below.
        u_seq = jnp.concatenate(
            [u_seq, jnp.zeros((T_pad - T, B, n1), f32)], axis=0)

    # VMEM per chunk ~ double-buffered (in + out) TT*B*n1*4 + small weights;
    # with TT=64 this is well under the scoped default on every generation
    # (v5e/v6e 128 MiB, v7x 64 MiB physical). Re-derive TT before scaling T/B.
    xhat1_seq = pl.pallas_call(
        rnn_rec_kernel,
        out_shape=jax.ShapeDtypeStruct((T_pad, B, n1), f32),
        grid_spec=pltpu.PrefetchScalarGridSpec(
            num_scalar_prefetch=0,
            grid=(n_chunks,),
            in_specs=[
                # u chunk streamed per grid step (auto double-buffered).
                pl.BlockSpec((TT, B, n1), lambda c: (c, 0, 0)),
                # Constant index maps -> DMA'd once, stay VMEM resident.
                pl.BlockSpec((B, n1), lambda c: (0, 0)),      # initial outs[1]
                pl.BlockSpec((n1, n1), lambda c: (0, 0)),     # Wr0^T
                pl.BlockSpec((n1, n1), lambda c: (0, 0)),     # D1^T
            ],
            out_specs=pl.BlockSpec((TT, B, n1), lambda c: (c, 0, 0)),
            scratch_shapes=[pltpu.VMEM((B, n1), f32)],        # carried state
        ),
        compiler_params=pltpu.CompilerParams(
            # Time is a true recurrence -> serial.
            # TODO(synk): add a leading "parallel" batch-block axis so v7x's
            # second TensorCore is used once the batch is large enough to split.
            dimension_semantics=("arbitrary",)),
    )(u_seq, out1_init, wr0t, d1t)
    xhat1_seq = xhat1_seq[:T]

    # ---- post-pass: batched output matmul with M = T*B rows -----------------
    xhat1_2d = xhat1_seq.reshape(M, n1)
    y_2d = pl.pallas_call(
        rnn_post_kernel,
        out_shape=jax.ShapeDtypeStruct((M, n2), f32),
        grid=(1,),
        in_specs=[pl.BlockSpec((M, n1), lambda i: (0, 0)),
                  pl.BlockSpec((n1, n2), lambda i: (0, 0))],
        out_specs=pl.BlockSpec((M, n2), lambda i: (0, 0)),
    )(xhat1_2d, wf1t)

    return (y_2d.reshape(T, B, n2),
            xhat0_2d.reshape(T, B, n0),
            xhat1_seq)


def rnn_forward(input_data, out1, D0, D1, Wf0, Wr0, Wf1, **kw):
    """Single-step API matching the PyTorch forward: (y, [xhat0, xhat1, y])."""
    y, xhat0, xhat1 = rnn_forward_sequence(
        input_data[None], out1, D0, D1, Wf0, Wr0, Wf1, **kw)
    return y[0], [xhat0[0], xhat1[0], y[0]]


def xavier_normal(key, shape):
    # matches torch.nn.init.xavier_normal_ for a (fan_out, fan_in) Linear weight
    fan_out, fan_in = shape
    std = (2.0 / (fan_in + fan_out)) ** 0.5
    return std * jax.random.normal(key, shape, dtype=jnp.float32)


def ref_sequence(x_seq, out1_init, D0, D1, Wf0, Wr0, Wf1):
    """Pure-JAX reference mirroring the PyTorch loop over timesteps."""
    hp = functools.partial(jnp.dot, precision=jax.lax.Precision.HIGHEST)
    ys, xh0s, xh1s = [], [], []
    out1 = out1_init
    for t in range(x_seq.shape[0]):
        xhat0 = hp(x_seq[t], D0.T)
        h1 = hp(xhat0, Wf0.T) + hp(out1, Wr0.T)
        x1 = jnp.tanh(h1)
        xhat1 = hp(x1, D1.T)
        y = hp(xhat1, Wf1.T)
        out1 = xhat1                      # outs[1] fed back next step
        ys.append(y); xh0s.append(xhat0); xh1s.append(xhat1)
    return jnp.stack(ys), jnp.stack(xh0s), jnp.stack(xh1s)


if __name__ == "__main__":
    # net_structure = [32, 64, 16], batch = 8, sequence length = 8
    n0, n1, n2 = 32, 64, 16
    B, T = 8, 8

    key = jax.random.PRNGKey(0)
    k_in, k_out1, k_f0, k_r0, k_f1 = jax.random.split(key, 5)

    # Parameter init per __init__: decor layers -> identity, rec/fwd -> xavier.
    D0 = jnp.eye(n0, dtype=jnp.float32)          # decor_layers[0].weight (n0,n0)
    D1 = jnp.eye(n1, dtype=jnp.float32)          # decor_layers[1].weight (n1,n1)
    Wf0 = xavier_normal(k_f0, (n1, n0))          # fwd_layers[0].weight   (n1,n0)
    Wr0 = xavier_normal(k_r0, (n1, n1))          # rec_layers[0].weight   (n1,n1)
    Wf1 = xavier_normal(k_f1, (n2, n1))          # fwd_layers[1].weight   (n2,n1)

    x_seq = jax.random.normal(k_in, (T, B, n0), dtype=jnp.float32)
    # Nonzero initial recurrent state exercises Wr0 from step 0 (reset_states()
    # would give zeros; subsequent steps carry x_hat1).
    out1_init = jax.random.normal(k_out1, (B, n1), dtype=jnp.float32)

    # --- full-sequence path: pre-pass + blocked recurrence + post-pass -------
    y_seq, xh0_seq, xh1_seq = rnn_forward_sequence(
        x_seq, out1_init, D0, D1, Wf0, Wr0, Wf1)
    jax.block_until_ready(y_seq)

    y_ref, xh0_ref, xh1_ref = ref_sequence(x_seq, out1_init, D0, D1, Wf0, Wr0, Wf1)
    assert jnp.allclose(xh0_seq, xh0_ref, atol=1e-4, rtol=1e-4)
    assert jnp.allclose(xh1_seq, xh1_ref, atol=1e-4, rtol=1e-4)
    assert jnp.allclose(y_seq, y_ref, atol=1e-4, rtol=1e-4)

    # --- padded-chunk path (T not a multiple of the time chunk) --------------
    T2 = 6
    y2, xh0_2, xh1_2 = rnn_forward_sequence(
        x_seq[:T2], out1_init, D0, D1, Wf0, Wr0, Wf1, time_chunk=4)
    jax.block_until_ready(y2)
    y2_ref, xh0_2ref, xh1_2ref = ref_sequence(
        x_seq[:T2], out1_init, D0, D1, Wf0, Wr0, Wf1)
    assert jnp.allclose(xh0_2, xh0_2ref, atol=1e-4, rtol=1e-4)
    assert jnp.allclose(xh1_2, xh1_2ref, atol=1e-4, rtol=1e-4)
    assert jnp.allclose(y2, y2_ref, atol=1e-4, rtol=1e-4)

    # --- single-step API parity with the PyTorch forward signature -----------
    y0, x_hats = rnn_forward(x_seq[0], out1_init, D0, D1, Wf0, Wr0, Wf1)
    jax.block_until_ready(y0)
    assert jnp.allclose(y0, y_ref[0], atol=1e-4, rtol=1e-4)
    assert jnp.allclose(x_hats[0], xh0_ref[0], atol=1e-4, rtol=1e-4)
    assert jnp.allclose(x_hats[1], xh1_ref[0], atol=1e-4, rtol=1e-4)
    assert jnp.allclose(x_hats[2], y0, atol=1e-6)

    # TODO(synk): noise_node/noise_weight branches and the *_perturbation /
    # decorrelation-update training methods are host-side training logic, not
    # part of the inference forward pass, and are not translated.
    print("KERNEL_OK")
</pallas_src>

<mosaic_0001>
module attributes {stable_mosaic.version = 11 : i64} {
  func.func @rnn_pre_kernel(%arg0: i32, %arg1: memref<64x32xf32, #tpu.memory_space<vmem>>, %arg2: memref<32x32xf32, #tpu.memory_space<vmem>>, %arg3: memref<32x64xf32, #tpu.memory_space<vmem>>, %arg4: memref<64x32xf32, #tpu.memory_space<vmem>>, %arg5: memref<64x64xf32, #tpu.memory_space<vmem>>) attributes {dimension_semantics = [#tpu.dimension_semantics<arbitrary>], iteration_bounds = array<i64: 1>, scalar_prefetch = 0 : i64, scratch_operands = 0 : i64, tpu.core_type = #tpu.core_type<tc>, window_params = [{pipeline_mode = #tpu.pipeline_mode<synchronous>, transform_indices = @transform_0, window_bounds = array<i64: 64, 32>}, {pipeline_mode = #tpu.pipeline_mode<synchronous>, transform_indices = @transform_1, window_bounds = array<i64: 32, 32>}, {pipeline_mode = #tpu.pipeline_mode<synchronous>, transform_indices = @transform_2, window_bounds = array<i64: 32, 64>}, {pipeline_mode = #tpu.pipeline_mode<synchronous>, transform_indices = @transform_3, window_bounds = array<i64: 64, 32>}, {pipeline_mode = #tpu.pipeline_mode<synchronous>, transform_indices = @transform_4, window_bounds = array<i64: 64, 64>}]} {
    %c0 = arith.constant 0 : index
    %c0_0 = arith.constant 0 : index
    %0 = vector.load %arg1[%c0, %c0_0] : memref<64x32xf32, #tpu.memory_space<vmem>>, vector<64x32xf32>
    %c0_1 = arith.constant 0 : index
    %c0_2 = arith.constant 0 : index
    %1 = vector.load %arg2[%c0_1, %c0_2] : memref<32x32xf32, #tpu.memory_space<vmem>>, vector<32x32xf32>
    %cst = arith.constant dense<0.000000e+00> : vector<64x32xf32>
    %2 = tpu.matmul %0, %1, %cst {dimension_numbers = #tpu.dot_dimension_numbers<[1], [0], [0], [1], [0, 0, 1, 1], [], []>} : vector<64x32xf32>, vector<32x32xf32>, vector<64x32xf32> -> vector<64x32xf32>
    %c0_3 = arith.constant 0 : index
    %c0_4 = arith.constant 0 : index
    %3 = vector.load %arg4[%c0_3, %c0_4] : memref<64x32xf32, #tpu.memory_space<vmem>>, vector<64x32xf32>
    tpu.vector_store %arg4[%c0_3, %c0_4], %2 {strides = array<i32>} : memref<64x32xf32, #tpu.memory_space<vmem>>, vector<64x32xf32>,
    %c0_5 = arith.constant 0 : index
    %c0_6 = arith.constant 0 : index
    %4 = vector.load %arg3[%c0_5, %c0_6] : memref<32x64xf32, #tpu.memory_space<vmem>>, vector<32x64xf32>
    %cst_7 = arith.constant dense<0.000000e+00> : vector<64x64xf32>
    %5 = tpu.matmul %2, %4, %cst_7 {dimension_numbers = #tpu.dot_dimension_numbers<[1], [0], [0], [1], [0, 0, 1, 1], [], []>} : vector<64x32xf32>, vector<32x64xf32>, vector<64x64xf32> -> vector<64x64xf32>
    %c0_8 = arith.constant 0 : index
    %c0_9 = arith.constant 0 : index
    %6 = vector.load %arg5[%c0_8, %c0_9] : memref<64x64xf32, #tpu.memory_space<vmem>>, vector<64x64xf32>
    tpu.vector_store %arg5[%c0_8, %c0_9], %5 {strides = array<i32>} : memref<64x64xf32, #tpu.memory_space<vmem>>, vector<64x64xf32>,
    return
  }
  func.func @transform_0(%arg0: i32) -> (i32, i32) {
    %c0_i32 = arith.constant 0 : i32
    %c0_i32_0 = arith.constant 0 : i32
    %c0_i32_1 = arith.constant 0 : i32
    return %c0_i32, %c0_i32_0 : i32, i32
  }
  func.func @transform_1(%arg0: i32) -> (i32, i32) {
    %c0_i32 = arith.constant 0 : i32
    %c0_i32_0 = arith.constant 0 : i32
    %c0_i32_1 = arith.constant 0 : i32
    return %c0_i32, %c0_i32_0 : i32, i32
  }
  func.func @transform_2(%arg0: i32) -> (i32, i32) {
    %c0_i32 = arith.constant 0 : i32
    %c0_i32_0 = arith.constant 0 : i32
    %c0_i32_1 = arith.constant 0 : i32
    return %c0_i32, %c0_i32_0 : i32, i32
  }
  func.func @transform_3(%arg0: i32) -> (i32, i32) {
    %c0_i32 = arith.constant 0 : i32
    %c0_i32_0 = arith.constant 0 : i32
    %c0_i32_1 = arith.constant 0 : i32
    return %c0_i32, %c0_i32_0 : i32, i32
  }
  func.func @transform_4(%arg0: i32) -> (i32, i32) {
    %c0_i32 = arith.constant 0 : i32
    %c0_i32_0 = arith.constant 0 : i32
    %c0_i32_1 = arith.constant 0 : i32
    return %c0_i32, %c0_i32_0 : i32, i32
  }
}

</mosaic_0001>

<llo_original>
// kernel: tpu_custom_call.1
$region0: #{tpu_custom_call.1}
  #allocation0 [shape = 'u32[]', space=smem, size = 0x4, offset = 0x4, fixed_abs, tag = 'smem constant byte address 0x4 - core index']
  #allocation1 [shape = 'u32[144,128]{1,0:T(1,128)}', space=vmem, size = 0x12000, scoped, tag = 'internal scratch']
  %s0 = inlined_call_operand.vmem [shape: f32[64,32], index: 0, kind: input, shape index: {}]
  %s1 = inlined_call_operand.vmem [shape: f32[32,32], index: 1, kind: input, shape index: {}]
  %s2 = inlined_call_operand.vmem [shape: f32[32,64], index: 2, kind: input, shape index: {}]
  %s3 = inlined_call_operand.vmem [shape: f32[64,32], index: 3, kind: output, shape index: {0}]
  %s4 = inlined_call_operand.hbm [shape: f32[64,64], index: 4, kind: output, shape index: {1}]
  %5 = xla_tuple %s3, %s4
  %s6 = sld [smem:[#allocation0]]
  $region30: #{tpu_custom_call.1} parent=0
    _
  %s8 = ssub.s32 1, %s6
  %s9 = scalar_select 0, %s8, %s6
  $region1: #{tpu_custom_call.1} parent=0
    #allocation2 [shape = 'u8[32768]{0}', space=vmem, size = 0x8000, scoped, tag = 'output window, operand 1, single buffered']
    #allocation3 [shape = 's32[1]{0}', space=sflag, size = 0x4, scoped, tag = 'scoped memory for tpu_custom_call.1']
    %10 = vsyncpa [#allocation3], 0
    // Predicated region
    $region2: #{tpu_custom_call.1} parent=1 // pred_check
      _
    $region3: #{tpu_custom_call.1} parent=1 // pred_check_branch
      %12 = sbr.rel (0) target = $region5
    $region4: #{tpu_custom_call.1} parent=1 // pred_region
      _
    $region5: #{tpu_custom_call.1} parent=1 // pred_fallthru
      _
    // Predicated region
    $region6: #{tpu_custom_call.1} parent=1 // pred_check
      _
    $region7: #{tpu_custom_call.1} parent=1 // pred_check_branch
      %14 = sbr.rel (0) target = $region9
    $region8: #{tpu_custom_call.1} parent=1 // pred_region
      _
    $region9: #{tpu_custom_call.1} parent=1 // pred_fallthru
      _
    // Predicated region
    $region10: #{tpu_custom_call.1} parent=1 // pred_check
      _
    $region11: #{tpu_custom_call.1} parent=1 // pred_check_branch
      %16 = sbr.rel (0) target = $region13
    $region12: #{tpu_custom_call.1} parent=1 // pred_region
      _
    $region13: #{tpu_custom_call.1} parent=1 // pred_fallthru
      _
    %v17 = vld [vmem:[%s0] sm:$0xff]
    %v18 = vld [vmem:[%s0 + $0x8] sm:$0xff]
    %v19 = vld [vmem:[%s0 + $0x10] sm:$0xff]
    %v20 = vld [vmem:[%s0 + $0x18] sm:$0xff]
    %v21 = vld [vmem:[%s0 + $0x20] sm:$0xff]
    %v22 = vld [vmem:[%s0 + $0x28] sm:$0xff]
    %v23 = vld [vmem:[%s0 + $0x30] sm:$0xff]
    %v24 = vld [vmem:[%s0 + $0x38] sm:$0xff]
    %v25 = vld [vmem:[%s1] sm:$0xff]
    %v26 = vld [vmem:[%s1 + $0x8] sm:$0xff]
    %v27 = vld [vmem:[%s1 + $0x10] sm:$0xff]
    %v28 = vld [vmem:[%s1 + $0x18] sm:$0xff]
    %vm29 = vcmask 261120
    %v31 = vsel %vm29, %v17, 0
    %v34 = vsel %vm29, %v18, 0
    %v37 = vsel %vm29, %v19, 0
    %v40 = vsel %vm29, %v20, 0
    %v43 = vsel %vm29, %v21, 0
    %v46 = vsel %vm29, %v22, 0
    %v49 = vsel %vm29, %v23, 0
    %v52 = vsel %vm29, %v24, 0
    %54 = vmatprep.subr.mxu0 0.0
    %55 = vmatpush1.msra.mxu0 0.0
    %56 = vmatprep.subr.mxu0 0.0
    %57 = vmatpush1.msra.mxu0 0.0
    %58 = vmatprep.subr.mxu0 0.0
    %59 = vmatpush1.msra.mxu0 0.0
    %60 = vmatprep.subr.mxu0 0.0
    %61 = vmatpush1.msra.mxu0 0.0
    %62 = vmatprep.subr.mxu0 0.0
    %63 = vmatpush1.msra.mxu0 0.0
    %64 = vmatprep.subr.mxu0 0.0
    %65 = vmatpush1.msra.mxu0 0.0
    %66 = vmatprep.subr.mxu0 0.0
    %67 = vmatpush1.msra.mxu0 0.0
    %68 = vmatprep.subr.mxu0 0.0
    %69 = vmatpush1.msra.mxu0 0.0
    %70 = vmatprep.subr.mxu0 0.0
    %71 = vmatpush1.msra.mxu0 0.0
    %72 = vmatprep.subr.mxu0 0.0
    %73 = vmatpush1.msra.mxu0 0.0
    %74 = vmatprep.subr.mxu0 0.0
    %75 = vmatpush1.msra.mxu0 0.0
    %76 = vmatprep.subr.mxu0 0.0
    %77 = vmatpush1.msra.mxu0 0.0
    %78 = vmatprep.subr.mxu0 0.0
    %79 = vmatpush1.msra.mxu0 %v28
    %80 = vmatprep.subr.mxu0 0.0
    %81 = vmatpush1.msra.mxu0 %v27
    %82 = vmatprep.subr.mxu0 0.0
    %83 = vmatpush1.msra.mxu0 %v26
    %84 = vmatprep.subr.mxu0 0.0
    %85 = vmatpush1.msra.mxu0 %v25
    %86 = vmatprep.subr.mxu0 0.0
    %87 = vmatpush2.msra.mxu0 0.0
    %88 = vmatprep.subr.mxu0 0.0
    %89 = vmatpush2.msra.mxu0 0.0
    %90 = vmatprep.subr.mxu0 0.0
    %91 = vmatpush2.msra.mxu0 0.0
    %92 = vmatprep.subr.mxu0 0.0
    %93 = vmatpush2.msra.mxu0 0.0
    %94 = vmatprep.subr.mxu0 0.0
    %95 = vmatpush2.msra.mxu0 0.0
    %96 = vmatprep.subr.mxu0 0.0
    %97 = vmatpush2.msra.mxu0 0.0
    %98 = vmatprep.subr.mxu0 0.0
    %99 = vmatpush2.msra.mxu0 0.0
    %100 = vmatprep.subr.mxu0 0.0
    %101 = vmatpush2.msra.mxu0 0.0
    %102 = vmatprep.subr.mxu0 0.0
    %103 = vmatpush2.msra.mxu0 0.0
    %104 = vmatprep.subr.mxu0 0.0
    %105 = vmatpush2.msra.mxu0 0.0
    %106 = vmatprep.subr.mxu0 0.0
    %107 = vmatpush2.msra.mxu0 0.0
    %108 = vmatprep.subr.mxu0 0.0
    %109 = vmatpush2.msra.mxu0 0.0
    %110 = vmatprep.subr.mxu0 0.0
    %111 = vmatpush2.msra.mxu0 0.0
    %112 = vmatprep.subr.mxu0 0.0
    %113 = vmatpush2.msra.mxu0 0.0
    %114 = vmatprep.subr.mxu0 0.0
    %115 = vmatpush2.msra.mxu0 0.0
    %116 = vmatprep.subr.mxu0 0.0
    %117 = vmatpush2.msra.mxu0 0.0
    %118 = vmatprep.mubr.f32.mxu0 0.0
    %119 = vmatmul.mubr.f32.gmra.mxu0 %v31
    %v120 = vpop.f32.mrf.mxu0
    %v121 = vadd.f32 0.0, %v120
    %v122 = vpop.f32.mrf.mxu0
    %123 = vmatprep.mubr.f32.mxu0 0.0
    %124 = vmatmul.mubr.f32.gmra.mxu0 %v34
    %v125 = vpop.f32.mrf.mxu0
    %v126 = vadd.f32 0.0, %v125
    %v127 = vpop.f32.mrf.mxu0
    %128 = vmatprep.mubr.f32.mxu0 0.0
    %129 = vmatmul.mubr.f32.gmra.mxu0 %v37
    %v130 = vpop.f32.mrf.mxu0
    %v131 = vadd.f32 0.0, %v130
    %v132 = vpop.f32.mrf.mxu0
    %133 = vmatprep.mubr.f32.mxu0 0.0
    %134 = vmatmul.mubr.f32.gmra.mxu0 %v40
    %v135 = vpop.f32.mrf.mxu0
    %v136 = vadd.f32 0.0, %v135
    %v137 = vpop.f32.mrf.mxu0
    %138 = vmatprep.mubr.f32.mxu0 0.0
    %139 = vmatmul.mubr.f32.gmra.mxu0 %v43
    %v140 = vpop.f32.mrf.mxu0
    %v141 = vadd.f32 0.0, %v140
    %v142 = vpop.f32.mrf.mxu0
    %143 = vmatprep.mubr.f32.mxu0 0.0
    %144 = vmatmul.mubr.f32.gmra.mxu0 %v46
    %v145 = vpop.f32.mrf.mxu0
    %v146 = vadd.f32 0.0, %v145
    %v147 = vpop.f32.mrf.mxu0
    %148 = vmatprep.mubr.f32.mxu0 0.0
    %149 = vmatmul.mubr.f32.gmra.mxu0 %v49
    %v150 = vpop.f32.mrf.mxu0
    %v151 = vadd.f32 0.0, %v150
    %v152 = vpop.f32.mrf.mxu0
    %153 = vmatprep.mubr.f32.mxu0 0.0
    %154 = vmatmul.mubr.f32.gmra.mxu0 %v52
    %v155 = vpop.f32.mrf.mxu0
    %v156 = vadd.f32 0.0, %v155
    %v157 = vpop.f32.mrf.mxu0
    %158 = vdwg.mxu0
    %159 = vst.msk [vmem:[%s3] sm:$0xff] %vm29, %v121
    %160 = vst.msk [vmem:[%s3 + $0x8] sm:$0xff] %vm29, %v126
    %161 = vst.msk [vmem:[%s3 + $0x10] sm:$0xff] %vm29, %v131
    %162 = vst.msk [vmem:[%s3 + $0x18] sm:$0xff] %vm29, %v136
    %163 = vst.msk [vmem:[%s3 + $0x20] sm:$0xff] %vm29, %v141
    %164 = vst.msk [vmem:[%s3 + $0x28] sm:$0xff] %vm29, %v146
    %165 = vst.msk [vmem:[%s3 + $0x30] sm:$0xff] %vm29, %v151
    %166 = vst.msk [vmem:[%s3 + $0x38] sm:$0xff] %vm29, %v156
    %v167 = vld [vmem:[%s2] sm:$0xff]
    %v168 = vld [vmem:[%s2 + $0x8] sm:$0xff]
    %v169 = vld [vmem:[%s2 + $0x10] sm:$0xff]
    %v170 = vld [vmem:[%s2 + $0x18] sm:$0xff]
    %v172 = vsel %vm29, %v121, 0
    %v175 = vsel %vm29, %v126, 0
    %v178 = vsel %vm29, %v131, 0
    %v181 = vsel %vm29, %v136, 0
    %v184 = vsel %vm29, %v141, 0
    %v187 = vsel %vm29, %v146, 0
    %v190 = vsel %vm29, %v151, 0
    %v193 = vsel %vm29, %v156, 0
    %195 = vmatprep.subr.mxu0 0.0
    %196 = vmatpush1.msra.mxu0 0.0
    %197 = vmatprep.subr.mxu0 0.0
    %198 = vmatpush1.msra.mxu0 0.0
    %199 = vmatprep.subr.mxu0 0.0
    %200 = vmatpush1.msra.mxu0 0.0
    %201 = vmatprep.subr.mxu0 0.0
    %202 = vmatpush1.msra.mxu0 0.0
    %203 = vmatprep.subr.mxu0 0.0
    %204 = vmatpush1.msra.mxu0 0.0
    %205 = vmatprep.subr.mxu0 0.0
    %206 = vmatpush1.msra.mxu0 0.0
    %207 = vmatprep.subr.mxu0 0.0
    %208 = vmatpush1.msra.mxu0 0.0
    %209 = vmatprep.subr.mxu0 0.0
    %210 = vmatpush1.msra.mxu0 0.0
    %211 = vmatprep.subr.mxu0 0.0
    %212 = vmatpush1.msra.mxu0 0.0
    %213 = vmatprep.subr.mxu0 0.0
    %214 = vmatpush1.msra.mxu0 0.0
    %215 = vmatprep.subr.mxu0 0.0
    %216 = vmatpush1.msra.mxu0 0.0
    %217 = vmatprep.subr.mxu0 0.0
    %218 = vmatpush1.msra.mxu0 0.0
    %219 = vmatprep.subr.mxu0 0.0
    %220 = vmatpush1.msra.mxu0 %v170
    %221 = vmatprep.subr.mxu0 0.0
    %222 = vmatpush1.msra.mxu0 %v169
    %223 = vmatprep.subr.mxu0 0.0
    %224 = vmatpush1.msra.mxu0 %v168
    %225 = vmatprep.subr.mxu0 0.0
    %226 = vmatpush1.msra.mxu0 %v167
    %227 = vmatprep.subr.mxu0 0.0
    %228 = vmatpush2.msra.mxu0 0.0
    %229 = vmatprep.subr.mxu0 0.0
    %230 = vmatpush2.msra.mxu0 0.0
    %231 = vmatprep.subr.mxu0 0.0
    %232 = vmatpush2.msra.mxu0 0.0
    %233 = vmatprep.subr.mxu0 0.0
    %234 = vmatpush2.msra.mxu0 0.0
    %235 = vmatprep.subr.mxu0 0.0
    %236 = vmatpush2.msra.mxu0 0.0
    %237 = vmatprep.subr.mxu0 0.0
    %238 = vmatpush2.msra.mxu0 0.0
    %239 = vmatprep.subr.mxu0 0.0
    %240 = vmatpush2.msra.mxu0 0.0
    %241 = vmatprep.subr.mxu0 0.0
    %242 = vmatpush2.msra.mxu0 0.0
    %243 = vmatprep.subr.mxu0 0.0
    %244 = vmatpush2.msra.mxu0 0.0
    %245 = vmatprep.subr.mxu0 0.0
    %246 = vmatpush2.msra.mxu0 0.0
    %247 = vmatprep.subr.mxu0 0.0
    %248 = vmatpush2.msra.mxu0 0.0
    %249 = vmatprep.subr.mxu0 0.0
    %250 = vmatpush2.msra.mxu0 0.0
    %251 = vmatprep.subr.mxu0 0.0
    %252 = vmatpush2.msra.mxu0 0.0
    %253 = vmatprep.subr.mxu0 0.0
    %254 = vmatpush2.msra.mxu0 0.0
    %255 = vmatprep.subr.mxu0 0.0
    %256 = vmatpush2.msra.mxu0 0.0
    %257 = vmatprep.subr.mxu0 0.0
    %258 = vmatpush2.msra.mxu0 0.0
    %259 = vmatprep.mubr.f32.mxu0 0.0
    %260 = vmatmul.mubr.f32.gmra.mxu0 %v172
    %v261 = vpop.f32.mrf.mxu0
    %v262 = vadd.f32 0.0, %v261
    %v263 = vpop.f32.mrf.mxu0
    %264 = vmatprep.mubr.f32.mxu0 0.0
    %265 = vmatmul.mubr.f32.gmra.mxu0 %v175
    %v266 = vpop.f32.mrf.mxu0
    %v267 = vadd.f32 0.0, %v266
    %v268 = vpop.f32.mrf.mxu0
    %269 = vmatprep.mubr.f32.mxu0 0.0
    %270 = vmatmul.mubr.f32.gmra.mxu0 %v178
    %v271 = vpop.f32.mrf.mxu0
    %v272 = vadd.f32 0.0, %v271
    %v273 = vpop.f32.mrf.mxu0
    %274 = vmatprep.mubr.f32.mxu0 0.0
    %275 = vmatmul.mubr.f32.gmra.mxu0 %v181
    %v276 = vpop.f32.mrf.mxu0
    %v277 = vadd.f32 0.0, %v276
    %v278 = vpop.f32.mrf.mxu0
    %279 = vmatprep.mubr.f32.mxu0 0.0
    %280 = vmatmul.mubr.f32.gmra.mxu0 %v184
    %v281 = vpop.f32.mrf.mxu0
    %v282 = vadd.f32 0.0, %v281
    %v283 = vpop.f32.mrf.mxu0
    %284 = vmatprep.mubr.f32.mxu0 0.0
    %285 = vmatmul.mubr.f32.gmra.mxu0 %v187
    %v286 = vpop.f32.mrf.mxu0
    %v287 = vadd.f32 0.0, %v286
    %v288 = vpop.f32.mrf.mxu0
    %289 = vmatprep.mubr.f32.mxu0 0.0
    %290 = vmatmul.mubr.f32.gmra.mxu0 %v190
    %v291 = vpop.f32.mrf.mxu0
    %v292 = vadd.f32 0.0, %v291
    %v293 = vpop.f32.mrf.mxu0
    %294 = vmatprep.mubr.f32.mxu0 0.0
    %295 = vmatmul.mubr.f32.gmra.mxu0 %v193
    %v296 = vpop.f32.mrf.mxu0
    %v297 = vadd.f32 0.0, %v296
    %v298 = vpop.f32.mrf.mxu0
    %299 = vdwg.mxu0
    %vm300 = vcmask 523264
    %301 = vst.msk [vmem:[#allocation2] sm:$0xff] %vm300, %v262
    %302 = vst.msk [vmem:[#allocation2 + $0x8] sm:$0xff] %vm300, %v267
    %303 = vst.msk [vmem:[#allocation2 + $0x10] sm:$0xff] %vm300, %v272
    %304 = vst.msk [vmem:[#allocation2 + $0x18] sm:$0xff] %vm300, %v277
    %305 = vst.msk [vmem:[#allocation2 + $0x20] sm:$0xff] %vm300, %v282
    %306 = vst.msk [vmem:[#allocation2 + $0x28] sm:$0xff] %vm300, %v287
    %307 = vst.msk [vmem:[#allocation2 + $0x30] sm:$0xff] %vm300, %v292
    %308 = vst.msk [vmem:[#allocation2 + $0x38] sm:$0xff] %vm300, %v297
    // Predicated region
    $region14: #{tpu_custom_call.1} parent=1 // pred_check
      _
    $region15: #{tpu_custom_call.1} parent=1 // pred_check_branch
      %310 = sbr.rel (0) target = $region17
    $region16: #{tpu_custom_call.1} parent=1 // pred_region
      _
    $region17: #{tpu_custom_call.1} parent=1 // pred_fallthru
      _
    // Predicated region
    $region18: #{tpu_custom_call.1} parent=1 // pred_check
      _
    $region19: #{tpu_custom_call.1} parent=1 // pred_check_branch
      %312 = sbr.rel (0) target = $region21
    $region20: #{tpu_custom_call.1} parent=1 // pred_region
      %s314 = ssub.s32 1024, 1024
      %315 = vsyncadd [#allocation3], %s314
      %s316 = sshll.u32 [#allocation2], 4
      %s317 = int_to_ptr.vmem [resolvable:$true] %s316
      %322 = dma.vmem_to_hbm [thread:$0]  %s317, 1024, %s4, [#allocation3], 128, 128, 8
    $region21: #{tpu_custom_call.1} parent=1 // pred_fallthru
      _
    // Predicated region
    $region22: #{tpu_custom_call.1} parent=1 // pred_check
      _
    $region23: #{tpu_custom_call.1} parent=1 // pred_check_branch
      %324 = sbr.rel (0) target = $region25
    $region24: #{tpu_custom_call.1} parent=1 // pred_region
      _
    $region25: #{tpu_custom_call.1} parent=1 // pred_fallthru
      _
    // Predicated region
    $region26: #{tpu_custom_call.1} parent=1 // pred_check
      _
    $region27: #{tpu_custom_call.1} parent=1 // pred_check_branch
      %326 = sbr.rel (0) target = $region29
    $region28: #{tpu_custom_call.1} parent=1 // pred_region
      %327 = dma.done [#allocation3], 1024
    $region29: #{tpu_custom_call.1} parent=1 // pred_fallthru
      _
    %328 = vsyncpa [#allocation3], 1

</llo_original>
